<compile_context>
chip_gen: v5e
topology: v5e:2x2
jax: 0.10.0
libtpu: 0.0.40
codegen_flags: <defaults>
</compile_context>

<pallas_src>
import jax
import jax.numpy as jnp
from jax.experimental import pallas as pl
from jax.experimental.pallas import tpu as pltpu


def linear_kernel(x_ref, wt_ref, b_ref, o_ref):
    # x_ref: (B, IN), wt_ref: (IN, OUT), b_ref: (1, OUT), o_ref: (B, OUT)
    in_features = x_ref.shape[1]
    # Unrolled VPU multiply-adds (IN is tiny and static): (B,1) * (1,OUT) -> (B,OUT)
    y = b_ref[...]  # (1, OUT); broadcasts over batch on the first add
    for k in range(in_features):
        y = y + x_ref[:, k:k + 1] * wt_ref[k:k + 1, :]
    o_ref[...] = y.astype(o_ref.dtype)


def simple_network_forward(x, weight, bias):
    """x: (B, in_features), weight: (out, in) [PyTorch Linear layout], bias: (out,)."""
    batch, in_features = x.shape
    out_features = weight.shape[0]

    # Transpose once in the wrapper (free at 3x2) so the kernel body has no .T.
    wt = jnp.transpose(weight)              # (in_features, out_features)
    bias2d = bias.reshape(1, out_features)  # 2-D, TPU-friendly tile

    vmem_spec = pl.BlockSpec(memory_space=pltpu.MemorySpace.VMEM)

    return pl.pallas_call(
        linear_kernel,
        out_shape=jax.ShapeDtypeStruct((batch, out_features), jnp.float32),
        in_specs=[vmem_spec, vmem_spec, vmem_spec],
        out_specs=vmem_spec,
    )(x, wt, bias2d)


if __name__ == "__main__":
    input_size = 2
    num_neurons = 3
    batch = 8

    key = jax.random.PRNGKey(0)
    kx, kw, kb = jax.random.split(key, 3)

    # Deterministic parameter init mimicking nn.Linear: U(-1/sqrt(in), 1/sqrt(in))
    bound = 1.0 / jnp.sqrt(jnp.float32(input_size))
    weight = jax.random.uniform(
        kw, (num_neurons, input_size), jnp.float32, -bound, bound
    )
    bias = jax.random.uniform(kb, (num_neurons,), jnp.float32, -bound, bound)

    x = jax.random.normal(kx, (batch, input_size), jnp.float32)

    y = simple_network_forward(x, weight, bias)
    jax.block_until_ready(y)

    # Correctness check against plain-JAX reference of the PyTorch forward.
    y_ref = x @ weight.T + bias
    assert y.shape == (batch, num_neurons)
    assert jnp.allclose(y, y_ref, atol=1e-5, rtol=1e-5)

    print("KERNEL_OK")
</pallas_src>

<mosaic_0001>
module attributes {stable_mosaic.version = 11 : i64} {
  func.func @linear_kernel(%arg0: memref<8x2xf32, #tpu.memory_space<vmem>>, %arg1: memref<2x3xf32, #tpu.memory_space<vmem>>, %arg2: memref<1x3xf32, #tpu.memory_space<vmem>>, %arg3: memref<8x3xf32, #tpu.memory_space<vmem>>) attributes {dimension_semantics = [], scalar_prefetch = 0 : i64, scratch_operands = 0 : i64, tpu.core_type = #tpu.core_type<tc>} {
    %c0 = arith.constant 0 : index
    %c0_0 = arith.constant 0 : index
    %0 = vector.load %arg2[%c0, %c0_0] : memref<1x3xf32, #tpu.memory_space<vmem>>, vector<1x3xf32>
    %c0_1 = arith.constant 0 : index
    %c0_2 = arith.constant 0 : index
    %1 = vector.load %arg0[%c0_1, %c0_2] : memref<8x2xf32, #tpu.memory_space<vmem>>, vector<8x1xf32>
    %c0_3 = arith.constant 0 : index
    %c0_4 = arith.constant 0 : index
    %2 = vector.load %arg1[%c0_3, %c0_4] : memref<2x3xf32, #tpu.memory_space<vmem>>, vector<1x3xf32>
    %3 = vector.broadcast %1 : vector<8x1xf32> to vector<8x3xf32>
    %4 = vector.broadcast %2 : vector<1x3xf32> to vector<8x3xf32>
    %5 = arith.mulf %3, %4 : vector<8x3xf32>
    %6 = vector.broadcast %0 : vector<1x3xf32> to vector<8x3xf32>
    %7 = arith.addf %6, %5 : vector<8x3xf32>
    %c0_5 = arith.constant 0 : index
    %c1 = arith.constant 1 : index
    %8 = vector.load %arg0[%c0_5, %c1] : memref<8x2xf32, #tpu.memory_space<vmem>>, vector<8x1xf32>
    %c1_6 = arith.constant 1 : index
    %c0_7 = arith.constant 0 : index
    %9 = vector.load %arg1[%c1_6, %c0_7] : memref<2x3xf32, #tpu.memory_space<vmem>>, vector<1x3xf32>
    %10 = vector.broadcast %8 : vector<8x1xf32> to vector<8x3xf32>
    %11 = vector.broadcast %9 : vector<1x3xf32> to vector<8x3xf32>
    %12 = arith.mulf %10, %11 : vector<8x3xf32>
    %13 = arith.addf %7, %12 : vector<8x3xf32>
    %c0_8 = arith.constant 0 : index
    %c0_9 = arith.constant 0 : index
    %14 = vector.load %arg3[%c0_8, %c0_9] : memref<8x3xf32, #tpu.memory_space<vmem>>, vector<8x3xf32>
    tpu.vector_store %arg3[%c0_8, %c0_9], %13 {strides = array<i32>} : memref<8x3xf32, #tpu.memory_space<vmem>>, vector<8x3xf32>,
    return
  }
}

</mosaic_0001>

<llo_original>
// kernel: tpu_custom_call.1
$region0: #{tpu_custom_call.1}
  #allocation0 [shape = 'u32[]', space=smem, size = 0x4, offset = 0x4, fixed_abs, tag = 'smem constant byte address 0x4 - core index']
  #allocation1 [shape = 'u32[72,128]{1,0:T(1,128)}', space=vmem, size = 0x9000, scoped, tag = 'internal scratch']
  %s0 = inlined_call_operand.vmem [shape: f32[8,2], index: 0, kind: input, shape index: {}]
  %s1 = inlined_call_operand.vmem [shape: f32[2,3], index: 1, kind: input, shape index: {}]
  %s2 = inlined_call_operand.vmem [shape: f32[1,3], index: 2, kind: input, shape index: {}]
  %s3 = inlined_call_operand.vmem [shape: f32[8,3], index: 3, kind: output, shape index: {}]
  %s4 = sld [smem:[#allocation0]]
  $region22: #{tpu_custom_call.1} parent=0
    _
  %s6 = ssub.s32 1, %s4
  %s7 = scalar_select 0, %s6, %s4
  // Predicated region
  $region2: #{tpu_custom_call.1} parent=0 // pred_check
    _
  $region3: #{tpu_custom_call.1} parent=0 // pred_check_branch
    %9 = sbr.rel (0) target = $region5
  $region4: #{tpu_custom_call.1} parent=0 // pred_region
    _
  $region5: #{tpu_custom_call.1} parent=0 // pred_fallthru
    _
  // Predicated region
  $region6: #{tpu_custom_call.1} parent=0 // pred_check
    _
  $region7: #{tpu_custom_call.1} parent=0 // pred_check_branch
    %11 = sbr.rel (0) target = $region9
  $region8: #{tpu_custom_call.1} parent=0 // pred_region
    _
  $region9: #{tpu_custom_call.1} parent=0 // pred_fallthru
    _
  // Predicated region
  $region10: #{tpu_custom_call.1} parent=0 // pred_check
    _
  $region11: #{tpu_custom_call.1} parent=0 // pred_check_branch
    %13 = sbr.rel (0) target = $region13
  $region12: #{tpu_custom_call.1} parent=0 // pred_region
    _
  $region13: #{tpu_custom_call.1} parent=0 // pred_fallthru
    _
  %v14 = vld [vmem:[%s2] sm:$0x1]
  %v15 = vld [vmem:[%s0] sm:$0xff]
  %v16 = vld [vmem:[%s1] sm:$0x1]
  %18 = vset.pattern.permute.xlu0 0
  %19 = vperm.xlu0 %18, %v15
  %v20 = vpop.permute.xlu0 %19
  %v22 = vperm.slane %v16, 0
  %v23 = vmul.f32 %v20, %v22
  %v25 = vperm.slane %v14, 0
  %v27 = vadd.f32 %v25, %v23
  %v28 = vld [vmem:[%s1 + $0x1] sm:$0x1]
  %29 = vset.pattern.permute.xlu0 1
  %30 = vperm.xlu0 %29, %v15
  %v31 = vpop.permute.xlu0 %30
  %v33 = vperm.slane %v28, 0
  %v34 = vmul.f32 %v31, %v33
  %v35 = vadd.f32 %v27, %v34
  %vm36 = vcmask 23552
  %37 = vst.msk [vmem:[%s3] sm:$0xff] %vm36, %v35
  // Predicated region
  $region14: #{tpu_custom_call.1} parent=0 // pred_check
    _
  $region15: #{tpu_custom_call.1} parent=0 // pred_check_branch
    %39 = sbr.rel (0) target = $region17
  $region16: #{tpu_custom_call.1} parent=0 // pred_region
    _
  $region17: #{tpu_custom_call.1} parent=0 // pred_fallthru
    _
  // Predicated region
  $region18: #{tpu_custom_call.1} parent=0 // pred_check
    _
  $region19: #{tpu_custom_call.1} parent=0 // pred_check_branch
    %41 = sbr.rel (0) target = $region21
  $region20: #{tpu_custom_call.1} parent=0 // pred_region
    _
  $region21: #{tpu_custom_call.1} parent=0 // pred_fallthru
    _

</llo_original>
